<compile_context>
chip_gen: v6e
topology: v6e:2x2x1
jax: 0.10.0
libtpu: 0.0.40
codegen_flags: <defaults>
</compile_context>

<pallas_src>
import jax
import jax.numpy as jnp
from jax.experimental import pallas as pl
from jax.experimental.pallas import tpu as pltpu


def _make_swish_kernel(beta):
    beta_f = float(beta)

    def kernel(x_ref, o_ref):
        x = x_ref[...]
        xf = x.astype(jnp.float32)
        z = jnp.float32(beta_f) * xf
        o_ref[...] = (xf * jax.nn.sigmoid(z)).astype(o_ref.dtype)

    return kernel


def _sublane_multiple(dtype):
    # f32 -> 8, bf16 -> 16, int8/fp8 -> 32 (sub-32-bit dtypes pack along sublanes)
    itemsize = jnp.dtype(dtype).itemsize
    return max(8, 8 * (4 // max(1, itemsize)))


def swish(x, beta=1.0, *, target_block_bytes=2 * 1024 * 1024):
    """Swish(x) = x * sigmoid(beta * x), computed in a Pallas TPU kernel."""
    orig_shape = x.shape
    dtype = x.dtype
    n = x.size
    if n == 0:
        return x

    itemsize = jnp.dtype(dtype).itemsize
    sub = _sublane_multiple(dtype)

    # ---- choose a lane-dense 2-D layout; avoid a padding copy when possible ----
    padded = False
    if n % 128 == 0:
        cols = 128
        for w in (4096, 2048, 1024, 512, 256):
            if n % w == 0:
                cols = w
                break
        rows = n // cols
        x2d = x.reshape(rows, cols)  # zero-copy reshape of contiguous data
    else:
        # Ragged size: fall back to padding to a (rows, 128) slab.
        cols = 128
        rows = -(-n // cols)
        pad = rows * cols - n
        x2d = jnp.pad(x.reshape(-1), (0, pad)).reshape(rows, cols)
        padded = True

    # ---- pick tile_rows so each block is ~target_block_bytes ----
    if rows <= sub:
        tile_rows = rows  # block equals the full (small) dim -> always legal
    else:
        tr = (target_block_bytes // (cols * itemsize)) // sub * sub
        tr = max(sub, tr)
        if tr >= rows:
            # Everything fits in one tile: split into >=2 so both v7x TCs stream.
            if rows >= 2 * sub:
                tr = max(sub, (rows // 2) // sub * sub)
            else:
                tr = rows
        tile_rows = min(tr, rows)

    num_tiles = -(-rows // tile_rows)

    out = pl.pallas_call(
        _make_swish_kernel(beta),
        out_shape=jax.ShapeDtypeStruct((rows, cols), dtype),
        grid=(num_tiles,),
        in_specs=[pl.BlockSpec((tile_rows, cols), lambda i: (i, 0))],
        out_specs=pl.BlockSpec((tile_rows, cols), lambda i: (i, 0)),
        compiler_params=pltpu.CompilerParams(
            dimension_semantics=("parallel",),
        ),
    )(x2d)

    if padded:
        return out.reshape(-1)[:n].reshape(orig_shape)
    return out.reshape(orig_shape)


if __name__ == "__main__":
    key = jax.random.PRNGKey(0)

    # NCHW-style activation shape consistent with the module's usage.
    x = jax.random.normal(key, (2, 4, 16, 16), dtype=jnp.float32)
    beta = 1.0  # module default

    y = jax.block_until_ready(swish(x, beta=beta))
    y_ref = x * jax.nn.sigmoid(beta * x)
    assert y.shape == x.shape and y.dtype == x.dtype
    assert jnp.allclose(y, y_ref, atol=1e-6, rtol=1e-6)

    # Also exercise the ragged (padded) path and a non-default beta.
    x2 = jax.random.normal(jax.random.PRNGKey(1), (3, 5, 7), dtype=jnp.float32)
    beta2 = 1.5
    y2 = jax.block_until_ready(swish(x2, beta=beta2))
    y2_ref = x2 * jax.nn.sigmoid(beta2 * x2)
    assert y2.shape == x2.shape and y2.dtype == x2.dtype
    assert jnp.allclose(y2, y2_ref, atol=1e-6, rtol=1e-6)

    # Exercise a bf16 input (sublane-packed dtype path).
    x3 = jax.random.normal(jax.random.PRNGKey(2), (2, 8, 32, 32), dtype=jnp.bfloat16)
    y3 = jax.block_until_ready(swish(x3, beta=beta))
    y3_ref = (x3.astype(jnp.float32) * jax.nn.sigmoid(x3.astype(jnp.float32))).astype(jnp.bfloat16)
    assert y3.shape == x3.shape and y3.dtype == x3.dtype
    assert jnp.allclose(y3.astype(jnp.float32), y3_ref.astype(jnp.float32), atol=1e-2, rtol=1e-2)

    print("KERNEL_OK")
</pallas_src>

<mosaic_0001>
module attributes {stable_mosaic.version = 11 : i64} {
  func.func @kernel(%arg0: i32, %arg1: memref<1x2048xf32, #tpu.memory_space<vmem>>, %arg2: memref<1x2048xf32, #tpu.memory_space<vmem>>) attributes {dimension_semantics = [#tpu.dimension_semantics<parallel>], iteration_bounds = array<i64: 1>, scalar_prefetch = 0 : i64, scratch_operands = 0 : i64, tpu.core_type = #tpu.core_type<tc>, window_params = [{transform_indices = @transform_0, window_bounds = array<i64: 1, 2048>}, {transform_indices = @transform_1, window_bounds = array<i64: 1, 2048>}]} {
    %c0 = arith.constant 0 : index
    %c0_0 = arith.constant 0 : index
    %0 = vector.load %arg1[%c0, %c0_0] : memref<1x2048xf32, #tpu.memory_space<vmem>>, vector<1x2048xf32>
    %cst = arith.constant 1.000000e+00 : f32
    %1 = vector.broadcast %cst : f32 to vector<1x2048xf32>
    %2 = arith.mulf %1, %0 : vector<1x2048xf32>
    %3 = arith.negf %2 : vector<1x2048xf32>
    %4 = math.exp %3 : vector<1x2048xf32>
    %cst_1 = arith.constant 1.000000e+00 : f32
    %5 = vector.broadcast %cst_1 : f32 to vector<1x2048xf32>
    %6 = arith.addf %5, %4 : vector<1x2048xf32>
    %7 = arith.divf %5, %6 : vector<1x2048xf32>
    %8 = arith.mulf %0, %7 : vector<1x2048xf32>
    %c0_2 = arith.constant 0 : index
    %c0_3 = arith.constant 0 : index
    %9 = vector.load %arg2[%c0_2, %c0_3] : memref<1x2048xf32, #tpu.memory_space<vmem>>, vector<1x2048xf32>
    tpu.vector_store %arg2[%c0_2, %c0_3], %8 {strides = array<i32>} : memref<1x2048xf32, #tpu.memory_space<vmem>>, vector<1x2048xf32>,
    return
  }
  func.func @transform_0(%arg0: i32) -> (i32, i32) {
    %c0_i32 = arith.constant 0 : i32
    %c0_i32_0 = arith.constant 0 : i32
    return %arg0, %c0_i32 : i32, i32
  }
  func.func @transform_1(%arg0: i32) -> (i32, i32) {
    %c0_i32 = arith.constant 0 : i32
    %c0_i32_0 = arith.constant 0 : i32
    return %arg0, %c0_i32 : i32, i32
  }
}

</mosaic_0001>

<llo_original>
// kernel: tpu_custom_call.1
$region0: #{tpu_custom_call.1}
  #allocation0 [shape = 'u32[]', space=smem, size = 0x4, offset = 0x4, fixed_abs, tag = 'smem constant byte address 0x4 - core index']
  #allocation1 [shape = 'u32[144,128]{1,0:T(1,128)}', space=vmem, size = 0x12000, scoped, tag = 'internal scratch']
  %s0 = inlined_call_operand.hbm [shape: f32[1,2048], index: 0, kind: input, shape index: {}]
  %s1 = inlined_call_operand.hbm [shape: f32[1,2048], index: 1, kind: output, shape index: {}]
  %s2 = sld [smem:[#allocation0]]
  $region18: #{tpu_custom_call.1} parent=0
    _
  %s4 = ssub.s32 1, %s2
  %s5 = scalar_select 0, %s4, %s2
  $region1: #{tpu_custom_call.1} parent=0
    #allocation2 [shape = 'u8[8192]{0}', space=vmem, size = 0x2000, scoped, tag = 'input window, operand 0, single buffered']
    #allocation3 [shape = 's32[1]{0}', space=sflag, size = 0x4, scoped, tag = 'scoped memory for tpu_custom_call.1']
    #allocation4 [shape = 's32[1]{0}', space=sflag, size = 0x4, scoped, tag = 'scoped memory for tpu_custom_call.1']
    #allocation5 [shape = 'u8[8192]{0}', space=vmem, size = 0x2000, scoped, tag = 'output window, operand 0, single buffered']
    %6 = vsyncpa [#allocation3], 0
    %7 = vsyncpa [#allocation4], 0
    // Predicated region
    $region2: #{tpu_custom_call.1} parent=1 // pred_check
      _
    $region3: #{tpu_custom_call.1} parent=1 // pred_check_branch
      %9 = sbr.rel (0) target = $region5
    $region4: #{tpu_custom_call.1} parent=1 // pred_region
      %s11 = ssub.s32 256, 256
      %12 = vsyncadd [#allocation3], %s11
      %s14 = sshll.u32 [#allocation2], 4
      %s15 = int_to_ptr.vmem [resolvable:$true] %s14
      %17 = dma.hbm_to_vmem [thread:$0]  %s0, 256, %s15, [#allocation3]
    $region5: #{tpu_custom_call.1} parent=1 // pred_fallthru
      _
    // Predicated region
    $region6: #{tpu_custom_call.1} parent=1 // pred_check
      _
    $region7: #{tpu_custom_call.1} parent=1 // pred_check_branch
      %19 = sbr.rel (0) target = $region9
    $region8: #{tpu_custom_call.1} parent=1 // pred_region
      %20 = dma.done [#allocation3], 256
    $region9: #{tpu_custom_call.1} parent=1 // pred_fallthru
      _
    %v21 = vld [vmem:[#allocation2] sm:$0xff]
    %v22 = vld [vmem:[#allocation2 + $0x8] sm:$0xff]
    %v23 = vxor.u32 %v21, 2147483648
    %v24 = vxor.u32 %v22, 2147483648
    %v25 = vmul.f32 %v23, 1.442695
    %v26 = vpow.pop %v25
    %v27 = vmul.f32 %v24, 1.442695
    %v28 = vpow.pop %v27
    %v29 = vadd.f32 %v26, 1.0
    %v30 = vadd.f32 %v28, 1.0
    %v31 = vrcp.pop %v29
    %v32 = vmul.f32 1.0, %v31
    %v33 = vrcp.pop %v30
    %v34 = vmul.f32 1.0, %v33
    %v35 = vmul.f32 %v21, %v32
    %v36 = vmul.f32 %v22, %v34
    %37 = vst [vmem:[#allocation5] sm:$0xff] %v35
    %38 = vst [vmem:[#allocation5 + $0x8] sm:$0xff] %v36
    // Predicated region
    $region10: #{tpu_custom_call.1} parent=1 // pred_check
      _
    $region11: #{tpu_custom_call.1} parent=1 // pred_check_branch
      %40 = sbr.rel (0) target = $region13
    $region12: #{tpu_custom_call.1} parent=1 // pred_region
      %s42 = ssub.s32 256, 256
      %43 = vsyncadd [#allocation4], %s42
      %s45 = sshll.u32 [#allocation5], 4
      %s46 = int_to_ptr.vmem [resolvable:$true] %s45
      %48 = dma.vmem_to_hbm [thread:$0]  %s46, 256, %s1, [#allocation4]
    $region13: #{tpu_custom_call.1} parent=1 // pred_fallthru
      _
    // Predicated region
    $region14: #{tpu_custom_call.1} parent=1 // pred_check
      _
    $region15: #{tpu_custom_call.1} parent=1 // pred_check_branch
      %50 = sbr.rel (0) target = $region17
    $region16: #{tpu_custom_call.1} parent=1 // pred_region
      %51 = dma.done [#allocation4], 256
    $region17: #{tpu_custom_call.1} parent=1 // pred_fallthru
      _
    %52 = vsyncpa [#allocation3], 1
    %53 = vsyncpa [#allocation4], 1

</llo_original>
